<compile_context>
chip_gen: v7x
topology: tpu7x:2x2x1
jax: 0.10.0
libtpu: 0.0.40
codegen_flags: <defaults>
</compile_context>

<pallas_src>
import math

import jax
import jax.numpy as jnp
from jax.experimental import pallas as pl
from jax.experimental.pallas import tpu as pltpu


# ------------------------------- kernel -------------------------------------

def _scale_shift_kernel(x_ref, scale_ref, shift_ref, o_ref):
    # x_ref: (tm, H_eff); scale_ref/shift_ref: (1, H_eff) broadcast over rows.
    # Compute promotes to the widest input dtype (f32 params -> f32 math),
    # result is stored in the output dtype (== x.dtype).
    o_ref[...] = (x_ref[...] * scale_ref[...] + shift_ref[...]).astype(o_ref.dtype)


# ------------------------------ helpers -------------------------------------

def _sublane_multiple(dtype):
    """Sublane packing multiple: 8 (f32), 16 (bf16/f16), 32 (int8/fp8)."""
    return max(8, 32 // jnp.dtype(dtype).itemsize)


def _fold_factor(M, H):
    """Smallest k with (k*H) % 128 == 0 and M % k == 0 (else 1, no fold)."""
    if H % 128 == 0:
        return 1
    k = 128 // math.gcd(H, 128)
    if k > 1 and M % k == 0:
        return k
    return 1


def _vmem_budget():
    """(target x-block bytes, scoped-VMEM limit) chosen per TPU generation."""
    try:
        cap = int(getattr(pltpu.get_tpu_info(), "vmem_capacity_bytes", 64 << 20))
    except Exception:
        cap = 64 << 20                       # conservative if query unavailable
    if cap <= (64 << 20):                    # v7x: 64 MiB physical, ~3.2 TB/s HBM
        return 6 << 20, 48 << 20             # big tiles amortize per-step cost
    else:                                    # v5e / v6e: 128 MiB physical
        return 4 << 20, 40 << 20             # 2x(in+out) stays well under limit


# ------------------------------- wrapper ------------------------------------

def scale_shift(x, scale, shift, *, target_block_bytes=None):
    """y = x * scale + shift, scale/shift broadcast over the last axis of x."""
    orig_shape = x.shape
    H = orig_shape[-1]
    assert scale.shape == (H,) and shift.shape == (H,)

    M = 1
    for d in orig_shape[:-1]:
        M *= d

    # ---- lane densification: fold rows into lanes when H isn't 128-aligned.
    k = _fold_factor(M, H)
    H_eff = H * k
    M_eff = M // k
    x2 = x.reshape(M_eff, H_eff)
    scale_eff = (jnp.tile(scale, k) if k > 1 else scale).reshape(1, H_eff)
    shift_eff = (jnp.tile(shift, k) if k > 1 else shift).reshape(1, H_eff)

    # ---- generation-aware byte budget for the x block.
    block_bytes, vmem_limit = _vmem_budget()
    if target_block_bytes is not None:
        block_bytes = target_block_bytes

    sub = _sublane_multiple(x.dtype)
    row_bytes = H_eff * x.dtype.itemsize
    tm = max(sub, (block_bytes // row_bytes) // sub * sub)

    if tm >= M_eff:
        # Whole array fits in a single block. If a sublane-aligned 2-way split
        # exists, split so the "parallel" grid axis uses both v7x TensorCores.
        half = ((((M_eff + 1) // 2) + sub - 1) // sub) * sub
        if M_eff % sub == 0 and half < M_eff:
            tm = half
        else:
            tm = M_eff                       # full-extent block (always legal)

    grid = (pl.cdiv(M_eff, tm),)             # tail block (if any) is masked

    out = pl.pallas_call(
        _scale_shift_kernel,
        out_shape=jax.ShapeDtypeStruct((M_eff, H_eff), x.dtype),
        grid=grid,
        in_specs=[
            pl.BlockSpec((tm, H_eff), lambda i: (i, 0)),   # x rows, pipelined
            pl.BlockSpec((1, H_eff), lambda i: (0, 0)),    # scale (DMA'd once)
            pl.BlockSpec((1, H_eff), lambda i: (0, 0)),    # shift (DMA'd once)
        ],
        out_specs=pl.BlockSpec((tm, H_eff), lambda i: (i, 0)),
        compiler_params=pltpu.CompilerParams(
            dimension_semantics=("parallel",),             # 2-TC sharding on v7x
            vmem_limit_bytes=vmem_limit),
    )(x2, scale_eff, shift_eff)

    return out.reshape(orig_shape)


# --------------------------- reference / main --------------------------------

def scale_shift_reference(x, scale, shift):
    return x * scale + shift


if __name__ == "__main__":
    key = jax.random.PRNGKey(0)
    kx, ks, kx2, kx3 = jax.random.split(key, 4)

    # --- Test 1: module-shaped small input (B, T, H), non-128 hidden size.
    #     Exercises the lane-densification path (H=32 folded to 128 lanes).
    B, T, H = 2, 8, 32
    x = jax.random.normal(kx, (B, T, H), jnp.float32)
    scale = jax.random.normal(ks, (H,), jnp.float32)       # module: randn(hidden)
    shift = jnp.zeros((H,), jnp.float32)                   # module: zeros(hidden)
    out = jax.block_until_ready(scale_shift(x, scale, shift))
    ref = scale_shift_reference(x, scale, shift)
    assert out.shape == x.shape, out.shape
    assert jnp.allclose(out, ref, atol=1e-6, rtol=1e-6), \
        f"max abs err {float(jnp.max(jnp.abs(out - ref)))}"

    # --- Test 2: row count not divisible by the tile -> masked tail block.
    H2 = 256
    x_b = jax.random.normal(kx2, (2, 10, H2), jnp.float32)     # M=20
    scale_b = jax.random.normal(ks, (H2,), jnp.float32)
    shift_b = jax.random.normal(kx2, (H2,), jnp.float32)
    out_b = jax.block_until_ready(
        scale_shift(x_b, scale_b, shift_b,
                    target_block_bytes=8 * H2 * 4))             # tm=8 -> grid=3
    assert jnp.allclose(out_b, scale_shift_reference(x_b, scale_b, shift_b),
                        atol=1e-6, rtol=1e-6)

    # --- Test 3: bf16 activations (sublane multiple 16), f32 params.
    H3 = 128
    x_c = jax.random.normal(kx3, (4, 16, H3), jnp.bfloat16)    # M=64
    scale_c = jax.random.normal(ks, (H3,), jnp.float32)
    shift_c = jax.random.normal(kx3, (H3,), jnp.float32)
    out_c = jax.block_until_ready(
        scale_shift(x_c, scale_c, shift_c,
                    target_block_bytes=16 * H3 * 2))            # tm=16 -> grid=4
    ref_c = (x_c.astype(jnp.float32) * scale_c + shift_c).astype(jnp.bfloat16)
    assert out_c.dtype == jnp.bfloat16
    assert jnp.allclose(out_c.astype(jnp.float32), ref_c.astype(jnp.float32),
                        atol=1e-2, rtol=1e-2)

    print("KERNEL_OK")
</pallas_src>

<mosaic_0001>
module attributes {stable_mosaic.version = 11 : i64} {
  func.func @_scale_shift_kernel(%arg0: i32, %arg1: memref<4x128xf32, #tpu.memory_space<vmem>>, %arg2: memref<1x128xf32, #tpu.memory_space<vmem>>, %arg3: memref<1x128xf32, #tpu.memory_space<vmem>>, %arg4: memref<4x128xf32, #tpu.memory_space<vmem>>) attributes {dimension_semantics = [#tpu.dimension_semantics<parallel>], iteration_bounds = array<i64: 1>, scalar_prefetch = 0 : i64, scratch_operands = 0 : i64, tpu.core_type = #tpu.core_type<tc>, window_params = [{transform_indices = @transform_0, window_bounds = array<i64: 4, 128>}, {pipeline_mode = #tpu.pipeline_mode<synchronous>, transform_indices = @transform_1, window_bounds = array<i64: 1, 128>}, {pipeline_mode = #tpu.pipeline_mode<synchronous>, transform_indices = @transform_2, window_bounds = array<i64: 1, 128>}, {transform_indices = @transform_3, window_bounds = array<i64: 4, 128>}]} {
    %c0 = arith.constant 0 : index
    %c0_0 = arith.constant 0 : index
    %0 = vector.load %arg1[%c0, %c0_0] : memref<4x128xf32, #tpu.memory_space<vmem>>, vector<4x128xf32>
    %c0_1 = arith.constant 0 : index
    %c0_2 = arith.constant 0 : index
    %1 = vector.load %arg2[%c0_1, %c0_2] : memref<1x128xf32, #tpu.memory_space<vmem>>, vector<1x128xf32>
    %2 = vector.broadcast %1 : vector<1x128xf32> to vector<4x128xf32>
    %3 = arith.mulf %0, %2 : vector<4x128xf32>
    %c0_3 = arith.constant 0 : index
    %c0_4 = arith.constant 0 : index
    %4 = vector.load %arg3[%c0_3, %c0_4] : memref<1x128xf32, #tpu.memory_space<vmem>>, vector<1x128xf32>
    %5 = vector.broadcast %4 : vector<1x128xf32> to vector<4x128xf32>
    %6 = arith.addf %3, %5 : vector<4x128xf32>
    %c0_5 = arith.constant 0 : index
    %c0_6 = arith.constant 0 : index
    %7 = vector.load %arg4[%c0_5, %c0_6] : memref<4x128xf32, #tpu.memory_space<vmem>>, vector<4x128xf32>
    tpu.vector_store %arg4[%c0_5, %c0_6], %6 {strides = array<i32>} : memref<4x128xf32, #tpu.memory_space<vmem>>, vector<4x128xf32>,
    return
  }
  func.func @transform_0(%arg0: i32) -> (i32, i32) {
    %c0_i32 = arith.constant 0 : i32
    %c0_i32_0 = arith.constant 0 : i32
    return %arg0, %c0_i32 : i32, i32
  }
  func.func @transform_1(%arg0: i32) -> (i32, i32) {
    %c0_i32 = arith.constant 0 : i32
    %c0_i32_0 = arith.constant 0 : i32
    %c0_i32_1 = arith.constant 0 : i32
    return %c0_i32, %c0_i32_0 : i32, i32
  }
  func.func @transform_2(%arg0: i32) -> (i32, i32) {
    %c0_i32 = arith.constant 0 : i32
    %c0_i32_0 = arith.constant 0 : i32
    %c0_i32_1 = arith.constant 0 : i32
    return %c0_i32, %c0_i32_0 : i32, i32
  }
  func.func @transform_3(%arg0: i32) -> (i32, i32) {
    %c0_i32 = arith.constant 0 : i32
    %c0_i32_0 = arith.constant 0 : i32
    return %arg0, %c0_i32 : i32, i32
  }
}

</mosaic_0001>

<llo_original>
// kernel: tpu_custom_call.1
$region0: #{tpu_custom_call.1}
  #allocation0 [shape = 'u32[]', space=smem, size = 0x4, offset = 0x4, fixed_abs, tag = 'smem constant byte address 0x4 - core index']
  #allocation1 [shape = 'u32[144,128]{1,0:T(1,128)}', space=vmem, size = 0x12000, scoped, tag = 'internal scratch']
  %s0 = inlined_call_operand.hbm [shape: f32[4,128], index: 0, kind: input, shape index: {}]
  %s1 = inlined_call_operand.vmem [shape: f32[1,128], index: 1, kind: input, shape index: {}]
  %s2 = inlined_call_operand.vmem [shape: f32[1,128], index: 2, kind: input, shape index: {}]
  %s3 = inlined_call_operand.hbm [shape: f32[4,128], index: 3, kind: output, shape index: {}]
  %s4 = sld [smem:[#allocation0]]
  $region26: #{tpu_custom_call.1} parent=0
    _
  %s6 = ssub.s32 1, %s4
  %s7 = scalar_select 0, %s6, %s4
  $region1: #{tpu_custom_call.1} parent=0
    #allocation2 [shape = 'u8[2048]{0}', space=vmem, size = 0x800, scoped, tag = 'input window, operand 0, single buffered']
    #allocation3 [shape = 's32[1]{0}', space=sflag, size = 0x4, scoped, tag = 'scoped memory for tpu_custom_call.1']
    #allocation4 [shape = 's32[1]{0}', space=sflag, size = 0x4, scoped, tag = 'scoped memory for tpu_custom_call.1']
    #allocation5 [shape = 'u8[2048]{0}', space=vmem, size = 0x800, scoped, tag = 'output window, operand 0, single buffered']
    %8 = vsyncpa [#allocation3], 0
    %9 = vsyncpa [#allocation4], 0
    // Predicated region
    $region2: #{tpu_custom_call.1} parent=1 // pred_check
      _
    $region3: #{tpu_custom_call.1} parent=1 // pred_check_branch
      %11 = sbr.rel (0) target = $region5
    $region4: #{tpu_custom_call.1} parent=1 // pred_region
      %s13 = ssub.s32 64, 64
      %14 = vsyncadd [#allocation3], %s13
      %s16 = sshll.u32 [#allocation2], 4
      %s17 = int_to_ptr.vmem [resolvable:$true] %s16
      %19 = dma.hbm_to_vmem [thread:$0]  %s0, 64, %s17, [#allocation3]
    $region5: #{tpu_custom_call.1} parent=1 // pred_fallthru
      _
    // Predicated region
    $region6: #{tpu_custom_call.1} parent=1 // pred_check
      _
    $region7: #{tpu_custom_call.1} parent=1 // pred_check_branch
      %21 = sbr.rel (0) target = $region9
    $region8: #{tpu_custom_call.1} parent=1 // pred_region
      _
    $region9: #{tpu_custom_call.1} parent=1 // pred_fallthru
      _
    // Predicated region
    $region10: #{tpu_custom_call.1} parent=1 // pred_check
      _
    $region11: #{tpu_custom_call.1} parent=1 // pred_check_branch
      %23 = sbr.rel (0) target = $region13
    $region12: #{tpu_custom_call.1} parent=1 // pred_region
      _
    $region13: #{tpu_custom_call.1} parent=1 // pred_fallthru
      _
    // Predicated region
    $region14: #{tpu_custom_call.1} parent=1 // pred_check
      _
    $region15: #{tpu_custom_call.1} parent=1 // pred_check_branch
      %25 = sbr.rel (0) target = $region17
    $region16: #{tpu_custom_call.1} parent=1 // pred_region
      %26 = dma.done [#allocation3], 64
    $region17: #{tpu_custom_call.1} parent=1 // pred_fallthru
      _
    %v27 = vld [vmem:[#allocation2] sm:$0xf]
    %v28 = vld [vmem:[%s1] sm:$0x1]
    %v30 = vlaneseq
    %v31 = vshrl.u32 %v30, 7
    %v32 = vsub.s32 0, %v31
    %v33 = vrot.slane %v28, %v32
    %v35 = vmul.f32 %v27, %v33
    %v36 = vld [vmem:[%s2] sm:$0x1]
    %v38 = vlaneseq
    %v39 = vshrl.u32 %v38, 7
    %v40 = vsub.s32 0, %v39
    %v41 = vrot.slane %v36, %v40
    %v43 = vadd.f32 %v35, %v41
    %44 = vst [vmem:[#allocation5] sm:$0xf] %v43
    // Predicated region
    $region18: #{tpu_custom_call.1} parent=1 // pred_check
      _
    $region19: #{tpu_custom_call.1} parent=1 // pred_check_branch
      %46 = sbr.rel (0) target = $region21
    $region20: #{tpu_custom_call.1} parent=1 // pred_region
      %s48 = ssub.s32 64, 64
      %49 = vsyncadd [#allocation4], %s48
      %s51 = sshll.u32 [#allocation5], 4
      %s52 = int_to_ptr.vmem [resolvable:$true] %s51
      %54 = dma.vmem_to_hbm [thread:$0]  %s52, 64, %s3, [#allocation4]
    $region21: #{tpu_custom_call.1} parent=1 // pred_fallthru
      _
    // Predicated region
    $region22: #{tpu_custom_call.1} parent=1 // pred_check
      _
    $region23: #{tpu_custom_call.1} parent=1 // pred_check_branch
      %56 = sbr.rel (0) target = $region25
    $region24: #{tpu_custom_call.1} parent=1 // pred_region
      %57 = dma.done [#allocation4], 64
    $region25: #{tpu_custom_call.1} parent=1 // pred_fallthru
      _
    %58 = vsyncpa [#allocation3], 1
    %59 = vsyncpa [#allocation4], 1

</llo_original>
